<compile_context>
chip_gen: v7x
topology: tpu7x:2x2x1
jax: 0.10.0
libtpu: 0.0.40
codegen_flags: <defaults>
</compile_context>

<pallas_src>
import functools

import jax
import jax.numpy as jnp
from jax import lax
from jax.experimental import pallas as pl
from jax.experimental.pallas import tpu as pltpu

EPS = 1e-5


def _conv3x3(x, w_ref, bias, keep_dn, keep_up):
    """3x3 conv (padding=1) on the lane-dense slab via ONE wide-K bf16 MXU matmul.

    x:       (N*H, W*Cin) f32 activation slab, rows=(n,h), cols=(w,ci)
    w_ref:   (3*W*Cin, W*Cout) bf16 stacked banded weights [B_dy0; B_dy1; B_dy2]
    bias:    (1, W*Cout) f32 per-channel bias tiled along W
    keep_dn: (N*H, 1) bool, False on rows with h == 0      (zero padding above)
    keep_up: (N*H, 1) bool, False on rows with h == H - 1  (zero padding below)
    """
    nh = x.shape[0]
    x_dn = jnp.where(keep_dn, pltpu.roll(x, shift=1, axis=0), 0.0)        # row r <- x[r-1]
    x_up = jnp.where(keep_up, pltpu.roll(x, shift=nh - 1, axis=0), 0.0)   # row r <- x[r+1]
    lhs = jnp.concatenate([x_dn, x, x_up], axis=1).astype(jnp.bfloat16)
    return jnp.dot(lhs, w_ref[...], preferred_element_type=jnp.float32) + bias


def _relu_bn(y, gamma, beta, inv_count, c, w):
    """ReLU then training-mode BatchNorm2d (batch stats, biased variance), fused.

    y:          (N*H, W*C) f32
    gamma/beta: (1, W*C) f32 per-channel affine params tiled along W
    Per-channel reduction = cross-sublane row sum, then log2(W) lane rolls that both sum
    the W groups of each channel and broadcast the result back to every lane position.
    """
    y = jnp.maximum(y, 0.0)

    def channel_allsum(v):                           # (1, W*C) -> per-channel totals, all lanes
        k = c
        while k < w * c:                             # log2(W) XLU lane rolls (W power of 2)
            v = v + pltpu.roll(v, shift=k, axis=1)
            k *= 2
        return v

    s = channel_allsum(jnp.sum(y, axis=0, keepdims=True))
    ss = channel_allsum(jnp.sum(y * y, axis=0, keepdims=True))
    mean = s * inv_count
    var = jnp.maximum(ss * inv_count - mean * mean, 0.0)       # biased variance
    scale = gamma * lax.rsqrt(var + EPS)
    shift = beta - mean * scale
    return y * scale + shift


def encoder_block_kernel(h, w, c, inv_count,
                         x_ref, w1_ref, bias1_ref, w2_ref, bias2_ref,
                         gamma_ref, beta_ref, pool_ref, skip_ref, yscr_ref):
    nh = x_ref.shape[0]
    gamma = gamma_ref[...]
    beta = beta_ref[...]

    # Per-image boundary masks realizing the H-direction zero padding.
    hh = lax.broadcasted_iota(jnp.int32, (nh, 1), 0) % h
    keep_dn = hh != 0
    keep_up = hh != (h - 1)

    # conv1 -> relu -> batchnorm (batch statistics)
    y = _conv3x3(x_ref[...], w1_ref, bias1_ref[...], keep_dn, keep_up)
    y = _relu_bn(y, gamma, beta, inv_count, c, w)

    # conv2 -> relu -> batchnorm (same BN module, fresh batch statistics)
    y = _conv3x3(y, w2_ref, bias2_ref[...], keep_dn, keep_up)
    y = _relu_bn(y, gamma, beta, inv_count, c, w)

    # skip connection: single dense bf16 store (halves the largest HBM writeback)
    skip_ref[...] = y.astype(skip_ref.dtype)

    # 2x2 / stride-2 maxpool:
    #   row pairs   : stride-2 sublane reads from the f32 scratch
    #   column pairs: one lane roll by C + max; even W blocks hold the result.
    yscr_ref[...] = y
    r2 = nh // 2
    hmax = jnp.maximum(yscr_ref[pl.ds(0, r2, 2), :], yscr_ref[pl.ds(1, r2, 2), :])
    cmax = jnp.maximum(hmax, pltpu.roll(hmax, shift=w * c - c, axis=1))
    pool_ref[...] = cmax          # fully lane-dense store; wrapper keeps even W blocks


def encoder_block(x_nchw, params):
    """x_nchw: (N, Cin, H, W) float32 (torch layout). Returns (pool, skip) in NCHW."""
    x = jnp.transpose(x_nchw, (0, 2, 3, 1)).astype(jnp.float32)              # -> NHWC
    N, H, W, Cin = x.shape
    w1 = jnp.transpose(params["conv1_w"], (2, 3, 1, 0)).astype(jnp.float32)  # (3,3,Cin,Cout)
    w2 = jnp.transpose(params["conv2_w"], (2, 3, 1, 0)).astype(jnp.float32)  # (3,3,Cout,Cout)
    Cout = w1.shape[-1]
    assert H % 2 == 0 and W % 2 == 0, "MaxPool2d(2,2) path assumes even H, W"
    assert (W & (W - 1)) == 0, "lane roll-doubling BN reduction assumes W is a power of two"
    f32 = jnp.float32

    # lane-dense activation slab: rows=(n,h), cols=(w,ci)
    x2 = x.reshape(N * H, W * Cin)

    # Stacked banded weights: B_dy[(wi*cin+ci),(wo*Cout+co)] = sum_kw [wi==wo+kw-1]*w[dy,kw,ci,co]
    # (missing band entries at image edges implement the W-direction zero padding); the three
    # dy bands are stacked along K so each conv is a single wide-K matmul.
    def banded_stacked(w_hwio, cin):
        mats = []
        for dy in range(3):
            b = jnp.zeros((W * cin, W * Cout), f32)
            for kw in range(3):
                b = b + jnp.kron(jnp.eye(W, k=1 - kw, dtype=f32), w_hwio[dy, kw])
            mats.append(b)
        return jnp.concatenate(mats, axis=0).astype(jnp.bfloat16)   # (3*W*cin, W*Cout)

    wstk1 = banded_stacked(w1, Cin)
    wstk2 = banded_stacked(w2, Cout)

    def lane_row(v):                          # per-channel (Cout,) -> (1, W*Cout)
        return jnp.tile(v.reshape(1, Cout).astype(f32), (1, W))

    bias1, bias2 = lane_row(params["conv1_b"]), lane_row(params["conv2_b"])
    gamma, beta = lane_row(params["bn_gamma"]), lane_row(params["bn_beta"])

    vmem = pl.BlockSpec(memory_space=pltpu.MemorySpace.VMEM)
    kernel = functools.partial(encoder_block_kernel, H, W, Cout, 1.0 / float(N * H * W))
    pool2d, skip2d = pl.pallas_call(
        kernel,
        out_shape=(
            jax.ShapeDtypeStruct((N * (H // 2), W * Cout), jnp.float32),  # full-width pool slab
            jax.ShapeDtypeStruct((N * H, W * Cout), jnp.bfloat16),        # bf16 skip
        ),
        in_specs=[vmem] * 7,
        out_specs=(vmem, vmem),
        scratch_shapes=[pltpu.VMEM((N * H, W * Cout), jnp.float32)],
    )(x2, wstk1, bias1, wstk2, bias2, gamma, beta)

    # layout plumbing back to torch NCHW (even W blocks of the pooled slab hold the maxes)
    skip = jnp.transpose(skip2d.reshape(N, H, W, Cout), (0, 3, 1, 2))
    pool = jnp.transpose(
        pool2d.reshape(N, H // 2, W // 2, 2, Cout)[:, :, :, 0, :], (0, 3, 1, 2))
    return pool, skip


def encoder_block_reference(x_nchw, params):
    """Pure-JAX (f32) reference of the PyTorch forward (training-mode BatchNorm)."""
    x = jnp.transpose(x_nchw, (0, 2, 3, 1))
    w1 = jnp.transpose(params["conv1_w"], (2, 3, 1, 0))
    w2 = jnp.transpose(params["conv2_w"], (2, 3, 1, 0))
    b1, b2 = params["conv1_b"], params["conv2_b"]
    g, bt = params["bn_gamma"], params["bn_beta"]

    def conv(x, w, b):
        y = lax.conv_general_dilated(x, w, (1, 1), ((1, 1), (1, 1)),
                                     dimension_numbers=("NHWC", "HWIO", "NHWC"))
        return y + b.reshape(1, 1, 1, -1)

    def relu_bn(y):
        y = jnp.maximum(y, 0.0)
        m = jnp.mean(y, axis=(0, 1, 2), keepdims=True)
        v = jnp.mean((y - m) ** 2, axis=(0, 1, 2), keepdims=True)
        return (y - m) * lax.rsqrt(v + EPS) * g.reshape(1, 1, 1, -1) + bt.reshape(1, 1, 1, -1)

    y = relu_bn(conv(x, w1, b1))
    y = relu_bn(conv(y, w2, b2))
    skip = y
    N, H, W, C = y.shape
    pool = y.reshape(N, H // 2, 2, W // 2, 2, C).max(axis=(2, 4))
    return jnp.transpose(pool, (0, 3, 1, 2)), jnp.transpose(skip, (0, 3, 1, 2))


if __name__ == "__main__":
    N, Cin, Cout, H, W = 2, 4, 8, 16, 16

    key = jax.random.PRNGKey(0)
    k1, k2, k3, k4, kx = jax.random.split(key, 5)
    params = {
        "conv1_w": jax.random.normal(k1, (Cout, Cin, 3, 3), jnp.float32) * 0.1,
        "conv1_b": jax.random.normal(k2, (Cout,), jnp.float32) * 0.1,
        "conv2_w": jax.random.normal(k3, (Cout, Cout, 3, 3), jnp.float32) * 0.1,
        "conv2_b": jax.random.normal(k4, (Cout,), jnp.float32) * 0.1,
        "bn_gamma": jnp.ones((Cout,), jnp.float32),   # PyTorch BatchNorm2d default init
        "bn_beta": jnp.zeros((Cout,), jnp.float32),
    }
    x = jax.random.normal(kx, (N, Cin, H, W), jnp.float32)

    pool, skip = jax.block_until_ready(encoder_block(x, params))
    pool_exp, skip_exp = jax.block_until_ready(encoder_block_reference(x, params))

    assert pool.shape == (N, Cout, H // 2, W // 2) and skip.shape == (N, Cout, H, W)
    # bf16 MXU operands / bf16 skip store (f32 accumulation) vs the all-f32 reference.
    assert jnp.allclose(skip, skip_exp, atol=5e-2, rtol=5e-2)
    assert jnp.allclose(pool, pool_exp, atol=5e-2, rtol=5e-2)

    print("KERNEL_OK")
</pallas_src>

<mosaic_0001>
module attributes {stable_mosaic.version = 11 : i64} {
  func.func @encoder_block_kernel(%arg0: memref<32x64xf32, #tpu.memory_space<vmem>>, %arg1: memref<192x128xbf16, #tpu.memory_space<vmem>>, %arg2: memref<1x128xf32, #tpu.memory_space<vmem>>, %arg3: memref<384x128xbf16, #tpu.memory_space<vmem>>, %arg4: memref<1x128xf32, #tpu.memory_space<vmem>>, %arg5: memref<1x128xf32, #tpu.memory_space<vmem>>, %arg6: memref<1x128xf32, #tpu.memory_space<vmem>>, %arg7: memref<16x128xf32, #tpu.memory_space<vmem>>, %arg8: memref<32x128xbf16, #tpu.memory_space<vmem>>, %arg9: memref<32x128xf32, #tpu.memory_space<vmem>>) attributes {dimension_semantics = [], scalar_prefetch = 0 : i64, scratch_operands = 1 : i64, tpu.core_type = #tpu.core_type<tc>} {
    %c0 = arith.constant 0 : index
    %c0_0 = arith.constant 0 : index
    %0 = vector.load %arg5[%c0, %c0_0] : memref<1x128xf32, #tpu.memory_space<vmem>>, vector<1x128xf32>
    %c0_1 = arith.constant 0 : index
    %c0_2 = arith.constant 0 : index
    %1 = vector.load %arg6[%c0_1, %c0_2] : memref<1x128xf32, #tpu.memory_space<vmem>>, vector<1x128xf32>
    %2 = tpu.iota {dimensions = array<i32: 0>} : vector<32x1xi32>
    %c16_i32 = arith.constant 16 : i32
    %c0_i32 = arith.constant 0 : i32
    %3 = arith.cmpi eq, %c16_i32, %c0_i32 : i32
    %c1_i32 = arith.constant 1 : i32
    %4 = arith.select %3, %c1_i32, %c16_i32 : i32
    %5 = vector.broadcast %4 : i32 to vector<32x1xi32>
    %6 = arith.remsi %2, %5 : vector<32x1xi32>
    %c0_i32_3 = arith.constant 0 : i32
    %7 = vector.broadcast %c0_i32_3 : i32 to vector<32x1xi32>
    %8 = arith.cmpi ne, %6, %7 : vector<32x1xi32>
    %c0_i32_4 = arith.constant 0 : i32
    %9 = vector.broadcast %c0_i32_4 : i32 to vector<32x1xi32>
    %10 = arith.cmpi slt, %6, %9 : vector<32x1xi32>
    %c0_i32_5 = arith.constant 0 : i32
    %11 = arith.cmpi slt, %4, %c0_i32_5 : i32
    %12 = vector.broadcast %11 : i1 to vector<32x1xi1>
    %13 = vector.broadcast %12 : vector<32x1xi1> to vector<32x1xi1>
    %14 = arith.xori %10, %13 : vector<32x1xi1>
    %15 = arith.andi %14, %8 : vector<32x1xi1>
    %16 = vector.broadcast %4 : i32 to vector<32x1xi32>
    %17 = arith.addi %6, %16 : vector<32x1xi32>
    %18 = arith.select %15, %17, %6 : vector<32x1xi1>, vector<32x1xi32>
    %c0_i32_6 = arith.constant 0 : i32
    %19 = vector.broadcast %c0_i32_6 : i32 to vector<32x1xi32>
    %20 = arith.cmpi ne, %18, %19 : vector<32x1xi32>
    %c15_i32 = arith.constant 15 : i32
    %21 = vector.broadcast %c15_i32 : i32 to vector<32x1xi32>
    %22 = arith.cmpi ne, %18, %21 : vector<32x1xi32>
    %c0_7 = arith.constant 0 : index
    %c0_8 = arith.constant 0 : index
    %23 = vector.load %arg0[%c0_7, %c0_8] : memref<32x64xf32, #tpu.memory_space<vmem>>, vector<32x64xf32>
    %c0_9 = arith.constant 0 : index
    %c0_10 = arith.constant 0 : index
    %24 = vector.load %arg2[%c0_9, %c0_10] : memref<1x128xf32, #tpu.memory_space<vmem>>, vector<1x128xf32>
    %c1_i32_11 = arith.constant 1 : i32
    %25 = tpu.dynamic_rotate %23 by %c1_i32_11 dim 0 : vector<32x64xf32>, i32 -> vector<32x64xf32>
    %cst = arith.constant 0.000000e+00 : f32
    %26 = vector.shape_cast %20 : vector<32x1xi1> to vector<32x1xi1>
    %27 = vector.broadcast %26 : vector<32x1xi1> to vector<32x64xi1>
    %28 = vector.broadcast %cst : f32 to vector<32x64xf32>
    %29 = arith.select %27, %25, %28 : vector<32x64xi1>, vector<32x64xf32>
    %c31_i32 = arith.constant 31 : i32
    %30 = tpu.dynamic_rotate %23 by %c31_i32 dim 0 : vector<32x64xf32>, i32 -> vector<32x64xf32>
    %cst_12 = arith.constant 0.000000e+00 : f32
    %31 = vector.shape_cast %22 : vector<32x1xi1> to vector<32x1xi1>
    %32 = vector.broadcast %31 : vector<32x1xi1> to vector<32x64xi1>
    %33 = vector.broadcast %cst_12 : f32 to vector<32x64xf32>
    %34 = arith.select %32, %30, %33 : vector<32x64xi1>, vector<32x64xf32>
    %35 = tpu.concatenate %29, %23, %34 in 1 : vector<32x64xf32>, vector<32x64xf32>, vector<32x64xf32> -> vector<32x192xf32>
    %36 = arith.truncf %35 : vector<32x192xf32> to vector<32x192xbf16>
    %c0_13 = arith.constant 0 : index
    %c0_14 = arith.constant 0 : index
    %37 = vector.load %arg1[%c0_13, %c0_14] : memref<192x128xbf16, #tpu.memory_space<vmem>>, vector<192x128xbf16>
    %cst_15 = arith.constant dense<0.000000e+00> : vector<32x128xf32>
    %38 = tpu.matmul %36, %37, %cst_15 {dimension_numbers = #tpu.dot_dimension_numbers<[1], [0], [0], [1], [0, 0, 1, 1], [], []>} : vector<32x192xbf16>, vector<192x128xbf16>, vector<32x128xf32> -> vector<32x128xf32>
    %39 = vector.broadcast %24 : vector<1x128xf32> to vector<32x128xf32>
    %40 = arith.addf %38, %39 : vector<32x128xf32>
    %cst_16 = arith.constant 0.000000e+00 : f32
    %41 = vector.broadcast %cst_16 : f32 to vector<32x128xf32>
    %42 = arith.maximumf %40, %41 : vector<32x128xf32>
    %cst_17 = arith.constant dense<0.000000e+00> : vector<128xf32>
    %43 = vector.multi_reduction <add>, %42, %cst_17 [0] : vector<32x128xf32> to vector<128xf32>
    %44 = vector.shape_cast %43 : vector<128xf32> to vector<1x128xf32>
    %c8_i32 = arith.constant 8 : i32
    %45 = tpu.dynamic_rotate %44 by %c8_i32 dim 1 : vector<1x128xf32>, i32 -> vector<1x128xf32>
    %46 = arith.addf %44, %45 : vector<1x128xf32>
    %c16_i32_18 = arith.constant 16 : i32
    %47 = tpu.dynamic_rotate %46 by %c16_i32_18 dim 1 : vector<1x128xf32>, i32 -> vector<1x128xf32>
    %48 = arith.addf %46, %47 : vector<1x128xf32>
    %c32_i32 = arith.constant 32 : i32
    %49 = tpu.dynamic_rotate %48 by %c32_i32 dim 1 : vector<1x128xf32>, i32 -> vector<1x128xf32>
    %50 = arith.addf %48, %49 : vector<1x128xf32>
    %c64_i32 = arith.constant 64 : i32
    %51 = tpu.dynamic_rotate %50 by %c64_i32 dim 1 : vector<1x128xf32>, i32 -> vector<1x128xf32>
    %52 = arith.addf %50, %51 : vector<1x128xf32>
    %53 = arith.mulf %42, %42 : vector<32x128xf32>
    %cst_19 = arith.constant dense<0.000000e+00> : vector<128xf32>
    %54 = vector.multi_reduction <add>, %53, %cst_19 [0] : vector<32x128xf32> to vector<128xf32>
    %55 = vector.shape_cast %54 : vector<128xf32> to vector<1x128xf32>
    %c8_i32_20 = arith.constant 8 : i32
    %56 = tpu.dynamic_rotate %55 by %c8_i32_20 dim 1 : vector<1x128xf32>, i32 -> vector<1x128xf32>
    %57 = arith.addf %55, %56 : vector<1x128xf32>
    %c16_i32_21 = arith.constant 16 : i32
    %58 = tpu.dynamic_rotate %57 by %c16_i32_21 dim 1 : vector<1x128xf32>, i32 -> vector<1x128xf32>
    %59 = arith.addf %57, %58 : vector<1x128xf32>
    %c32_i32_22 = arith.constant 32 : i32
    %60 = tpu.dynamic_rotate %59 by %c32_i32_22 dim 1 : vector<1x128xf32>, i32 -> vector<1x128xf32>
    %61 = arith.addf %59, %60 : vector<1x128xf32>
    %c64_i32_23 = arith.constant 64 : i32
    %62 = tpu.dynamic_rotate %61 by %c64_i32_23 dim 1 : vector<1x128xf32>, i32 -> vector<1x128xf32>
    %63 = arith.addf %61, %62 : vector<1x128xf32>
    %cst_24 = arith.constant 0.001953125 : f32
    %64 = vector.broadcast %cst_24 : f32 to vector<1x128xf32>
    %65 = arith.mulf %52, %64 : vector<1x128xf32>
    %cst_25 = arith.constant 0.001953125 : f32
    %66 = vector.broadcast %cst_25 : f32 to vector<1x128xf32>
    %67 = arith.mulf %63, %66 : vector<1x128xf32>
    %68 = arith.mulf %65, %65 : vector<1x128xf32>
    %69 = arith.subf %67, %68 : vector<1x128xf32>
    %cst_26 = arith.constant 0.000000e+00 : f32
    %70 = vector.broadcast %cst_26 : f32 to vector<1x128xf32>
    %71 = arith.maximumf %69, %70 : vector<1x128xf32>
    %cst_27 = arith.constant 9.99999974E-6 : f32
    %72 = vector.broadcast %cst_27 : f32 to vector<1x128xf32>
    %73 = arith.addf %71, %72 : vector<1x128xf32>
    %74 = math.rsqrt %73 : vector<1x128xf32>
    %75 = arith.mulf %0, %74 : vector<1x128xf32>
    %76 = arith.mulf %65, %75 : vector<1x128xf32>
    %77 = arith.subf %1, %76 : vector<1x128xf32>
    %78 = vector.broadcast %75 : vector<1x128xf32> to vector<32x128xf32>
    %79 = arith.mulf %42, %78 : vector<32x128xf32>
    %80 = vector.broadcast %77 : vector<1x128xf32> to vector<32x128xf32>
    %81 = arith.addf %79, %80 : vector<32x128xf32>
    %c0_28 = arith.constant 0 : index
    %c0_29 = arith.constant 0 : index
    %82 = vector.load %arg4[%c0_28, %c0_29] : memref<1x128xf32, #tpu.memory_space<vmem>>, vector<1x128xf32>
    %c1_i32_30 = arith.constant 1 : i32
    %83 = tpu.dynamic_rotate %81 by %c1_i32_30 dim 0 : vector<32x128xf32>, i32 -> vector<32x128xf32>
    %cst_31 = arith.constant 0.000000e+00 : f32
    %84 = vector.shape_cast %20 : vector<32x1xi1> to vector<32x1xi1>
    %85 = vector.broadcast %84 : vector<32x1xi1> to vector<32x128xi1>
    %86 = vector.broadcast %cst_31 : f32 to vector<32x128xf32>
    %87 = arith.select %85, %83, %86 : vector<32x128xi1>, vector<32x128xf32>
    %c31_i32_32 = arith.constant 31 : i32
    %88 = tpu.dynamic_rotate %81 by %c31_i32_32 dim 0 : vector<32x128xf32>, i32 -> vector<32x128xf32>
    %cst_33 = arith.constant 0.000000e+00 : f32
    %89 = vector.shape_cast %22 : vector<32x1xi1> to vector<32x1xi1>
    %90 = vector.broadcast %89 : vector<32x1xi1> to vector<32x128xi1>
    %91 = vector.broadcast %cst_33 : f32 to vector<32x128xf32>
    %92 = arith.select %90, %88, %91 : vector<32x128xi1>, vector<32x128xf32>
    %93 = tpu.concatenate %87, %81, %92 in 1 : vector<32x128xf32>, vector<32x128xf32>, vector<32x128xf32> -> vector<32x384xf32>
    %94 = arith.truncf %93 : vector<32x384xf32> to vector<32x384xbf16>
    %c0_34 = arith.constant 0 : index
    %c0_35 = arith.constant 0 : index
    %95 = vector.load %arg3[%c0_34, %c0_35] : memref<384x128xbf16, #tpu.memory_space<vmem>>, vector<384x128xbf16>
    %cst_36 = arith.constant dense<0.000000e+00> : vector<32x128xf32>
    %96 = tpu.matmul %94, %95, %cst_36 {dimension_numbers = #tpu.dot_dimension_numbers<[1], [0], [0], [1], [0, 0, 1, 1], [], []>} : vector<32x384xbf16>, vector<384x128xbf16>, vector<32x128xf32> -> vector<32x128xf32>
    %97 = vector.broadcast %82 : vector<1x128xf32> to vector<32x128xf32>
    %98 = arith.addf %96, %97 : vector<32x128xf32>
    %cst_37 = arith.constant 0.000000e+00 : f32
    %99 = vector.broadcast %cst_37 : f32 to vector<32x128xf32>
    %100 = arith.maximumf %98, %99 : vector<32x128xf32>
    %cst_38 = arith.constant dense<0.000000e+00> : vector<128xf32>
    %101 = vector.multi_reduction <add>, %100, %cst_38 [0] : vector<32x128xf32> to vector<128xf32>
    %102 = vector.shape_cast %101 : vector<128xf32> to vector<1x128xf32>
    %c8_i32_39 = arith.constant 8 : i32
    %103 = tpu.dynamic_rotate %102 by %c8_i32_39 dim 1 : vector<1x128xf32>, i32 -> vector<1x128xf32>
    %104 = arith.addf %102, %103 : vector<1x128xf32>
    %c16_i32_40 = arith.constant 16 : i32
    %105 = tpu.dynamic_rotate %104 by %c16_i32_40 dim 1 : vector<1x128xf32>, i32 -> vector<1x128xf32>
    %106 = arith.addf %104, %105 : vector<1x128xf32>
    %c32_i32_41 = arith.constant 32 : i32
    %107 = tpu.dynamic_rotate %106 by %c32_i32_41 dim 1 : vector<1x128xf32>, i32 -> vector<1x128xf32>
    %108 = arith.addf %106, %107 : vector<1x128xf32>
    %c64_i32_42 = arith.constant 64 : i32
    %109 = tpu.dynamic_rotate %108 by %c64_i32_42 dim 1 : vector<1x128xf32>, i32 -> vector<1x128xf32>
    %110 = arith.addf %108, %109 : vector<1x128xf32>
    %111 = arith.mulf %100, %100 : vector<32x128xf32>
    %cst_43 = arith.constant dense<0.000000e+00> : vector<128xf32>
    %112 = vector.multi_reduction <add>, %111, %cst_43 [0] : vector<32x128xf32> to vector<128xf32>
    %113 = vector.shape_cast %112 : vector<128xf32> to vector<1x128xf32>
    %c8_i32_44 = arith.constant 8 : i32
    %114 = tpu.dynamic_rotate %113 by %c8_i32_44 dim 1 : vector<1x128xf32>, i32 -> vector<1x128xf32>
    %115 = arith.addf %113, %114 : vector<1x128xf32>
    %c16_i32_45 = arith.constant 16 : i32
    %116 = tpu.dynamic_rotate %115 by %c16_i32_45 dim 1 : vector<1x128xf32>, i32 -> vector<1x128xf32>
    %117 = arith.addf %115, %116 : vector<1x128xf32>
    %c32_i32_46 = arith.constant 32 : i32
    %118 = tpu.dynamic_rotate %117 by %c32_i32_46 dim 1 : vector<1x128xf32>, i32 -> vector<1x128xf32>
    %119 = arith.addf %117, %118 : vector<1x128xf32>
    %c64_i32_47 = arith.constant 64 : i32
    %120 = tpu.dynamic_rotate %119 by %c64_i32_47 dim 1 : vector<1x128xf32>, i32 -> vector<1x128xf32>
    %121 = arith.addf %119, %120 : vector<1x128xf32>
    %cst_48 = arith.constant 0.001953125 : f32
    %122 = vector.broadcast %cst_48 : f32 to vector<1x128xf32>
    %123 = arith.mulf %110, %122 : vector<1x128xf32>
    %cst_49 = arith.constant 0.001953125 : f32
    %124 = vector.broadcast %cst_49 : f32 to vector<1x128xf32>
    %125 = arith.mulf %121, %124 : vector<1x128xf32>
    %126 = arith.mulf %123, %123 : vector<1x128xf32>
    %127 = arith.subf %125, %126 : vector<1x128xf32>
    %cst_50 = arith.constant 0.000000e+00 : f32
    %128 = vector.broadcast %cst_50 : f32 to vector<1x128xf32>
    %129 = arith.maximumf %127, %128 : vector<1x128xf32>
    %cst_51 = arith.constant 9.99999974E-6 : f32
    %130 = vector.broadcast %cst_51 : f32 to vector<1x128xf32>
    %131 = arith.addf %129, %130 : vector<1x128xf32>
    %132 = math.rsqrt %131 : vector<1x128xf32>
    %133 = arith.mulf %0, %132 : vector<1x128xf32>
    %134 = arith.mulf %123, %133 : vector<1x128xf32>
    %135 = arith.subf %1, %134 : vector<1x128xf32>
    %136 = vector.broadcast %133 : vector<1x128xf32> to vector<32x128xf32>
    %137 = arith.mulf %100, %136 : vector<32x128xf32>
    %138 = vector.broadcast %135 : vector<1x128xf32> to vector<32x128xf32>
    %139 = arith.addf %137, %138 : vector<32x128xf32>
    %140 = arith.truncf %139 : vector<32x128xf32> to vector<32x128xbf16>
    %c0_52 = arith.constant 0 : index
    %c0_53 = arith.constant 0 : index
    %141 = vector.load %arg8[%c0_52, %c0_53] : memref<32x128xbf16, #tpu.memory_space<vmem>>, vector<32x128xbf16>
    tpu.vector_store %arg8[%c0_52, %c0_53], %140 {strides = array<i32>} : memref<32x128xbf16, #tpu.memory_space<vmem>>, vector<32x128xbf16>,
    %c0_54 = arith.constant 0 : index
    %c0_55 = arith.constant 0 : index
    %142 = vector.load %arg9[%c0_54, %c0_55] : memref<32x128xf32, #tpu.memory_space<vmem>>, vector<32x128xf32>
    tpu.vector_store %arg9[%c0_54, %c0_55], %139 {strides = array<i32>} : memref<32x128xf32, #tpu.memory_space<vmem>>, vector<32x128xf32>,
    %c0_56 = arith.constant 0 : index
    %c0_57 = arith.constant 0 : index
    %143 = tpu.strided_load %arg9[%c0_56, %c0_57] {strides = array<i32: 2, 1>} : memref<32x128xf32, #tpu.memory_space<vmem>>, vector<16x128xf32>
    %c1 = arith.constant 1 : index
    %c0_58 = arith.constant 0 : index
    %144 = tpu.strided_load %arg9[%c1, %c0_58] {strides = array<i32: 2, 1>} : memref<32x128xf32, #tpu.memory_space<vmem>>, vector<16x128xf32>
    %145 = arith.maximumf %143, %144 : vector<16x128xf32>
    %c120_i32 = arith.constant 120 : i32
    %146 = tpu.dynamic_rotate %145 by %c120_i32 dim 1 : vector<16x128xf32>, i32 -> vector<16x128xf32>
    %147 = arith.maximumf %145, %146 : vector<16x128xf32>
    %c0_59 = arith.constant 0 : index
    %c0_60 = arith.constant 0 : index
    %148 = vector.load %arg7[%c0_59, %c0_60] : memref<16x128xf32, #tpu.memory_space<vmem>>, vector<16x128xf32>
    tpu.vector_store %arg7[%c0_59, %c0_60], %147 {strides = array<i32>} : memref<16x128xf32, #tpu.memory_space<vmem>>, vector<16x128xf32>,
    return
  }
}

</mosaic_0001>

<llo_original>
// kernel: tpu_custom_call.1
$region0: #{tpu_custom_call.1}
  #allocation0 [shape = 'u32[]', space=smem, size = 0x4, offset = 0x4, fixed_abs, tag = 'smem constant byte address 0x4 - core index']
  #allocation1 [shape = 'u32[144,128]{1,0:T(1,128)}', space=vmem, size = 0x12000, scoped, tag = 'internal scratch']
  #allocation2 [shape = 'f32[32,128]{1,0:T(8,128)}', space=vmem, size = 0x4000, scoped, tag = 'scratch operand']
  %s0 = inlined_call_operand.hbm [shape: f32[32,64], index: 0, kind: input, shape index: {}]
  %s1 = inlined_call_operand.hbm [shape: bf16[192,128], index: 1, kind: input, shape index: {}]
  %s2 = inlined_call_operand.vmem [shape: f32[1,128], index: 2, kind: input, shape index: {}]
  %s3 = inlined_call_operand.hbm [shape: bf16[384,128], index: 3, kind: input, shape index: {}]
  %s4 = inlined_call_operand.vmem [shape: f32[1,128], index: 4, kind: input, shape index: {}]
  %s5 = inlined_call_operand.vmem [shape: f32[1,128], index: 5, kind: input, shape index: {}]
  %s6 = inlined_call_operand.vmem [shape: f32[1,128], index: 6, kind: input, shape index: {}]
  %s7 = inlined_call_operand.hbm [shape: f32[16,128], index: 7, kind: output, shape index: {0}]
  %s8 = inlined_call_operand.hbm [shape: bf16[32,128], index: 8, kind: output, shape index: {1}]
  %9 = xla_tuple %s7, %s8
  %s10 = sld [smem:[#allocation0]]
  $region58: #{tpu_custom_call.1} parent=0
    _
  %s12 = ssub.s32 1, %s10
  %s13 = scalar_select 0, %s12, %s10
  $region1: #{tpu_custom_call.1} parent=0
    #allocation3 [shape = 'u8[16384]{0}', space=vmem, size = 0x4000, scoped, tag = 'input window, operand 0, single buffered']
    #allocation4 [shape = 's32[1]{0}', space=sflag, size = 0x4, scoped, tag = 'scoped memory for tpu_custom_call.1']
    #allocation5 [shape = 's32[1]{0}', space=sflag, size = 0x4, scoped, tag = 'scoped memory for tpu_custom_call.1']
    #allocation6 [shape = 'u8[49152]{0}', space=vmem, size = 0xc000, scoped, tag = 'input window, operand 1, single buffered']
    #allocation7 [shape = 's32[1]{0}', space=sflag, size = 0x4, scoped, tag = 'scoped memory for tpu_custom_call.1']
    #allocation8 [shape = 'u8[98304]{0}', space=vmem, size = 0x18000, scoped, tag = 'input window, operand 3, single buffered']
    #allocation9 [shape = 'u8[8192]{0}', space=vmem, size = 0x2000, scoped, tag = 'output window, operand 0, single buffered']
    #allocation10 [shape = 'u8[8192]{0}', space=vmem, size = 0x2000, scoped, tag = 'output window, operand 1, single buffered']
    #allocation11 [shape = 's32[1]{0}', space=sflag, size = 0x4, scoped, tag = 'scoped memory for tpu_custom_call.1']
    %14 = vsyncpa [#allocation4], 0
    %15 = vsyncpa [#allocation7], 0
    %16 = vsyncpa [#allocation5], 0
    %17 = vsyncpa [#allocation11], 0
    // Predicated region
    $region2: #{tpu_custom_call.1} parent=1 // pred_check
      _
    $region3: #{tpu_custom_call.1} parent=1 // pred_check_branch
      %19 = sbr.rel (0) target = $region5
    $region4: #{tpu_custom_call.1} parent=1 // pred_region
      %s21 = ssub.s32 512, 512
      %22 = vsyncadd [#allocation4], %s21
      %s23 = sshll.u32 [#allocation3], 4
      %s24 = int_to_ptr.vmem [resolvable:$true] %s23
      %29 = dma.hbm_to_vmem [thread:$0]  %s0, 512, %s24, [#allocation4], 128, 128, 8
    $region5: #{tpu_custom_call.1} parent=1 // pred_fallthru
      _
    // Predicated region
    $region6: #{tpu_custom_call.1} parent=1 // pred_check
      _
    $region7: #{tpu_custom_call.1} parent=1 // pred_check_branch
      %31 = sbr.rel (0) target = $region9
    $region8: #{tpu_custom_call.1} parent=1 // pred_region
      %s33 = ssub.s32 1536, 1536
      %34 = vsyncadd [#allocation7], %s33
      %s35 = sshll.u32 [#allocation6], 4
      %s36 = int_to_ptr.vmem [resolvable:$true] %s35
      %41 = dma.hbm_to_vmem [thread:$0]  %s1, 1536, %s36, [#allocation7], 64, 64, 4
    $region9: #{tpu_custom_call.1} parent=1 // pred_fallthru
      _
    // Predicated region
    $region10: #{tpu_custom_call.1} parent=1 // pred_check
      _
    $region11: #{tpu_custom_call.1} parent=1 // pred_check_branch
      %43 = sbr.rel (0) target = $region13
    $region12: #{tpu_custom_call.1} parent=1 // pred_region
      _
    $region13: #{tpu_custom_call.1} parent=1 // pred_fallthru
      _
    // Predicated region
    $region14: #{tpu_custom_call.1} parent=1 // pred_check
      _
    $region15: #{tpu_custom_call.1} parent=1 // pred_check_branch
      %45 = sbr.rel (0) target = $region17
    $region16: #{tpu_custom_call.1} parent=1 // pred_region
      %s47 = ssub.s32 3072, 3072
      %48 = vsyncadd [#allocation7], %s47
      %s49 = sshll.u32 [#allocation8], 4
      %s50 = int_to_ptr.vmem [resolvable:$true] %s49
      %55 = dma.hbm_to_vmem [thread:$0]  %s3, 3072, %s50, [#allocation7], 64, 64, 4
    $region17: #{tpu_custom_call.1} parent=1 // pred_fallthru
      _
    // Predicated region
    $region18: #{tpu_custom_call.1} parent=1 // pred_check
      _
    $region19: #{tpu_custom_call.1} parent=1 // pred_check_branch
      %57 = sbr.rel (0) target = $region21
    $region20: #{tpu_custom_call.1} parent=1 // pred_region
      _
    $region21: #{tpu_custom_call.1} parent=1 // pred_fallthru
      _
    // Predicated region
    $region22: #{tpu_custom_call.1} parent=1 // pred_check
      _
    $region23: #{tpu_custom_call.1} parent=1 // pred_check_branch
      %59 = sbr.rel (0) target = $region25
    $region24: #{tpu_custom_call.1} parent=1 // pred_region
      _
    $region25: #{tpu_custom_call.1} parent=1 // pred_fallthru
      _
    // Predicated region
    $region26: #{tpu_custom_call.1} parent=1 // pred_check
      _
    $region27: #{tpu_custom_call.1} parent=1 // pred_check_branch
      %61 = sbr.rel (0) target = $region29
    $region28: #{tpu_custom_call.1} parent=1 // pred_region
      _
    $region29: #{tpu_custom_call.1} parent=1 // pred_fallthru
      _
    // Predicated region
    $region30: #{tpu_custom_call.1} parent=1 // pred_check
      _
    $region31: #{tpu_custom_call.1} parent=1 // pred_check_branch
      %63 = sbr.rel (0) target = $region33
    $region32: #{tpu_custom_call.1} parent=1 // pred_region
      %64 = dma.done [#allocation4], 512
    $region33: #{tpu_custom_call.1} parent=1 // pred_fallthru
      _
    // Predicated region
    $region34: #{tpu_custom_call.1} parent=1 // pred_check
      _
    $region35: #{tpu_custom_call.1} parent=1 // pred_check_branch
      %66 = sbr.rel (0) target = $region37
    $region36: #{tpu_custom_call.1} parent=1 // pred_region
      %67 = dma.done [#allocation7], 1536
    $region37: #{tpu_custom_call.1} parent=1 // pred_fallthru
      _
    // Predicated region
    $region38: #{tpu_custom_call.1} parent=1 // pred_check
      _
    $region39: #{tpu_custom_call.1} parent=1 // pred_check_branch
      %69 = sbr.rel (0) target = $region41
    $region40: #{tpu_custom_call.1} parent=1 // pred_region
      %70 = dma.done [#allocation7], 3072
    $region41: #{tpu_custom_call.1} parent=1 // pred_fallthru
      _
    %v72 = vld [vmem:[%s5] sm:$0x1]
    %v73 = vld [vmem:[%s6] sm:$0x1]
    %v74 = vlaneseq
    %v75 = vshrl.u32 %v74, 7
    %v76 = vadd.s32 %v75, 8
    %v77 = vadd.s32 %v75, 16
    %v78 = vadd.s32 %v75, 24
    %vm79 = vcmp.lt.s32.totalorder %v75, 0
    %v80 = vsub.s32 0, %v75
    %v81 = vsel %vm79, %v80, %v75
    %v82 = vshrl.u32 %v81, 4
    %v83 = vand.u32 %v81, 15
    %v84 = vsub.s32 0, %v83
    %v85 = vsel %vm79, %v84, %v83
    %vm86 = vcmp.lt.s32.totalorder %v76, 0
    %v87 = vsub.s32 0, %v76
    %v88 = vsel %vm86, %v87, %v76
    %v89 = vshrl.u32 %v88, 4
    %v90 = vand.u32 %v88, 15
    %v91 = vsub.s32 0, %v90
    %v92 = vsel %vm86, %v91, %v90
    %vm93 = vcmp.lt.s32.totalorder %v77, 0
    %v94 = vsub.s32 0, %v77
    %v95 = vsel %vm93, %v94, %v77
    %v96 = vshrl.u32 %v95, 4
    %v97 = vand.u32 %v95, 15
    %v98 = vsub.s32 0, %v97
    %v99 = vsel %vm93, %v98, %v97
    %vm100 = vcmp.lt.s32.totalorder %v78, 0
    %v101 = vsub.s32 0, %v78
    %v102 = vsel %vm100, %v101, %v78
    %v103 = vshrl.u32 %v102, 4
    %v104 = vand.u32 %v102, 15
    %v105 = vsub.s32 0, %v104
    %v106 = vsel %vm100, %v105, %v104
    %vm107 = vcmp.ne.s32.totalorder %v85, 0
    %vm108 = vcmp.ne.s32.totalorder %v92, 0
    %vm109 = vcmp.ne.s32.totalorder %v99, 0
    %vm110 = vcmp.ne.s32.totalorder %v106, 0
    %vm111 = vcmp.lt.s32.totalorder %v85, 0
    %vm112 = vcmp.lt.s32.totalorder %v92, 0
    %vm113 = vcmp.lt.s32.totalorder %v99, 0
    %vm114 = vcmp.lt.s32.totalorder %v106, 0
    %vm115 = vmand %vm111, %vm107
    %vm116 = vmand %vm112, %vm108
    %vm117 = vmand %vm113, %vm109
    %vm118 = vmand %vm114, %vm110
    %v119 = vadd.s32 %v85, 16
    %v120 = vadd.s32 %v92, 16
    %v121 = vadd.s32 %v99, 16
    %v122 = vadd.s32 %v106, 16
    %v123 = vsel %vm115, %v119, %v85
    %v124 = vsel %vm116, %v120, %v92
    %v125 = vsel %vm117, %v121, %v99
    %v126 = vsel %vm118, %v122, %v106
    %vm127 = vcmp.ne.s32.totalorder %v123, 0
    %vm128 = vcmp.ne.s32.totalorder %v124, 0
    %vm129 = vcmp.ne.s32.totalorder %v125, 0
    %vm130 = vcmp.ne.s32.totalorder %v126, 0
    %vm131 = vcmp.ne.s32.totalorder %v123, 15
    %vm132 = vcmp.ne.s32.totalorder %v124, 15
    %vm133 = vcmp.ne.s32.totalorder %v125, 15
    %vm134 = vcmp.ne.s32.totalorder %v126, 15
    %v135 = vld [vmem:[#allocation3] sm:$0xff]
    %v136 = vld [vmem:[#allocation3 + $0x8] sm:$0xff]
    %v137 = vld [vmem:[#allocation3 + $0x10] sm:$0xff]
    %v138 = vld [vmem:[#allocation3 + $0x18] sm:$0xff]
    %v139 = vld [vmem:[%s2] sm:$0x1]
    %v140 = vrot.slane %v135, 7
    %v141 = vrot.slane %v136, 7
    %v142 = vrot.slane %v137, 7
    %v143 = vrot.slane %v138, 7
    %vm144 = vcmp.lt.s32.totalorder %v75, 1
    %v145 = vsel %vm144, %v142, %v143
    %v146 = vsel %vm144, %v141, %v142
    %v147 = vsel %vm144, %v140, %v141
    %v148 = vsel %vm144, %v143, %v140
    %v149 = vsel %vm127, 1, 0
    %v150 = vsel %vm128, 1, 0
    %v151 = vsel %vm129, 1, 0
    %v152 = vsel %vm130, 1, 0
    %vm153 = vcmp.eq.s32.totalorder %v149, 1
    %vm154 = vcmp.eq.s32.totalorder %v150, 1
    %vm155 = vcmp.eq.s32.totalorder %v151, 1
    %vm156 = vcmp.eq.s32.totalorder %v152, 1
    %v157 = vsel %vm153, %v148, 0.0
    %v158 = vsel %vm154, %v147, 0.0
    %v159 = vsel %vm155, %v146, 0.0
    %v160 = vsel %vm156, %v145, 0.0
    %v161 = vrot.slane %v135, 1
    %v162 = vrot.slane %v136, 1
    %v163 = vrot.slane %v137, 1
    %v164 = vrot.slane %v138, 1
    %vm165 = vcmp.lt.s32.totalorder %v75, 7
    %v166 = vsel %vm165, %v163, %v164
    %v167 = vsel %vm165, %v162, %v163
    %v168 = vsel %vm165, %v161, %v162
    %v169 = vsel %vm165, %v164, %v161
    %v170 = vsel %vm131, 1, 0
    %v171 = vsel %vm132, 1, 0
    %v172 = vsel %vm133, 1, 0
    %v173 = vsel %vm134, 1, 0
    %vm174 = vcmp.eq.s32.totalorder %v170, 1
    %vm175 = vcmp.eq.s32.totalorder %v171, 1
    %vm176 = vcmp.eq.s32.totalorder %v172, 1
    %vm177 = vcmp.eq.s32.totalorder %v173, 1
    %v178 = vsel %vm174, %v168, 0.0
    %v179 = vsel %vm175, %v167, 0.0
    %v180 = vsel %vm176, %v166, 0.0
    %v181 = vsel %vm177, %v169, 0.0
    %186 = vrot.lane.b32.xlu0 %v135, 64
    %v187 = vpop.permute.xlu0 %186
    %188 = vrot.lane.b32.xlu0 %v136, 64
    %v189 = vpop.permute.xlu0 %188
    %190 = vrot.lane.b32.xlu0 %v137, 64
    %v191 = vpop.permute.xlu0 %190
    %192 = vrot.lane.b32.xlu0 %v138, 64
    %v193 = vpop.permute.xlu0 %192
    %vm198 = vcmask 523264
    %v199 = vsel %vm198, %v157, %v187
    %v200 = vsel %vm198, %v158, %v189
    %v201 = vsel %vm198, %v159, %v191
    %v202 = vsel %vm198, %v160, %v193
    %v203 = vpack.c.bf16 %v200, %v199
    %v204 = vpack.c.bf16 %v179, %v178
    %v205 = vpack.c.bf16 %v202, %v201
    %v206 = vpack.c.bf16 %v181, %v180
    %v207 = vld [vmem:[#allocation6] sm:$0xf]
    %v208 = vld [vmem:[#allocation6 + $0x4] sm:$0xf]
    %v209 = vld [vmem:[#allocation6 + $0x8] sm:$0xf]
    %v210 = vld [vmem:[#allocation6 + $0xc] sm:$0xf]
    %v211 = vld [vmem:[#allocation6 + $0x10] sm:$0xf]
    %v212 = vld [vmem:[#allocation6 + $0x14] sm:$0xf]
    %v213 = vld [vmem:[#allocation6 + $0x18] sm:$0xf]
    %v214 = vld [vmem:[#allocation6 + $0x1c] sm:$0xf]
    %v215 = vld [vmem:[#allocation6 + $0x20] sm:$0xf]
    %v216 = vld [vmem:[#allocation6 + $0x24] sm:$0xf]
    %v217 = vld [vmem:[#allocation6 + $0x28] sm:$0xf]
    %v218 = vld [vmem:[#allocation6 + $0x2c] sm:$0xf]
    %v219 = vld [vmem:[#allocation6 + $0x30] sm:$0xf]
    %v220 = vld [vmem:[#allocation6 + $0x34] sm:$0xf]
    %v221 = vld [vmem:[#allocation6 + $0x38] sm:$0xf]
    %v222 = vld [vmem:[#allocation6 + $0x3c] sm:$0xf]
    %v223 = vld [vmem:[#allocation6 + $0x40] sm:$0xf]
    %v224 = vld [vmem:[#allocation6 + $0x44] sm:$0xf]
    %v225 = vld [vmem:[#allocation6 + $0x48] sm:$0xf]
    %v226 = vld [vmem:[#allocation6 + $0x4c] sm:$0xf]
    %v227 = vld [vmem:[#allocation6 + $0x50] sm:$0xf]
    %v228 = vld [vmem:[#allocation6 + $0x54] sm:$0xf]
    %v229 = vld [vmem:[#allocation6 + $0x58] sm:$0xf]
    %v230 = vld [vmem:[#allocation6 + $0x5c] sm:$0xf]
    %v232 = vlaneseq
    %v233 = vshrl.u32 %v232, 7
    %v234 = vsub.s32 0, %v233
    %v235 = vrot.slane %v139, %v234
    %v261 = vunpack.c.l.b16 %v207
    %v262 = vunpack.c.l.b16 %v208
    %v263 = vunpack.c.l.b16 %v209
    %v264 = vunpack.c.l.b16 %v210
    %v265 = vunpack.c.l.b16 %v211
    %v266 = vunpack.c.l.b16 %v212
    %v267 = vunpack.c.l.b16 %v213
    %v268 = vunpack.c.l.b16 %v214
    %v269 = vunpack.c.l.b16 %v215
    %v270 = vunpack.c.l.b16 %v216
    %v271 = vunpack.c.l.b16 %v217
    %v272 = vunpack.c.l.b16 %v218
    %v273 = vunpack.c.l.b16 %v219
    %v274 = vunpack.c.l.b16 %v220
    %v275 = vunpack.c.l.b16 %v221
    %v276 = vunpack.c.l.b16 %v222
    %v277 = vunpack.c.l.b16 %v223
    %v278 = vunpack.c.l.b16 %v224
    %v279 = vunpack.c.l.b16 %v225
    %v280 = vunpack.c.l.b16 %v226
    %v281 = vunpack.c.l.b16 %v227
    %v282 = vunpack.c.l.b16 %v228
    %v283 = vunpack.c.l.b16 %v229
    %v284 = vunpack.c.l.b16 %v230
    %v285 = vpack.c.b16 %v262, %v261
    %v286 = vpack.c.b16 %v264, %v263
    %v287 = vpack.c.b16 %v266, %v265
    %v288 = vpack.c.b16 %v268, %v267
    %v289 = vpack.c.b16 %v270, %v269
    %v290 = vpack.c.b16 %v272, %v271
    %v291 = vpack.c.b16 %v274, %v273
    %v292 = vpack.c.b16 %v276, %v275
    %v293 = vpack.c.b16 %v278, %v277
    %v294 = vpack.c.b16 %v280, %v279
    %v295 = vpack.c.b16 %v282, %v281
    %v296 = vpack.c.b16 %v284, %v283
    %v310 = vsel %vm198, %v204, 0
    %v313 = vsel %vm198, %v206, 0
    %315 = vmatprep.subr.bf16.mxu0 0
    %316 = vmatpush1.bf16.msra.mxu0 %v285
    %317 = vmatprep.subr.bf16.mxu0 0
    %318 = vmatpush1.bf16.msra.mxu0 %v286
    %319 = vmatprep.subr.bf16.mxu0 0
    %320 = vmatpush1.bf16.msra.mxu0 %v287
    %321 = vmatprep.subr.bf16.mxu0 0
    %322 = vmatpush1.bf16.msra.mxu0 %v288
    %323 = vmatprep.subr.bf16.mxu0 0
    %324 = vmatpush1.bf16.msra.mxu0 %v289
    %325 = vmatprep.subr.bf16.mxu0 0
    %326 = vmatpush1.bf16.msra.mxu0 %v290
    %327 = vmatprep.subr.bf16.mxu0 0
    %328 = vmatpush1.bf16.msra.mxu0 %v291
    %329 = vmatprep.subr.bf16.mxu0 0
    %330 = vmatpush1.bf16.msra.mxu0 %v292
    %331 = vmatprep.subr.bf16.mxu0 0
    %332 = vmatpush1.bf16.msra.mxu0 %v293
    %333 = vmatprep.subr.bf16.mxu0 0
    %334 = vmatpush1.bf16.msra.mxu0 %v294
    %335 = vmatprep.subr.bf16.mxu0 0
    %336 = vmatpush1.bf16.msra.mxu0 %v295
    %337 = vmatprep.subr.bf16.mxu0 0
    %338 = vmatpush1.bf16.msra.mxu0 %v296
    %339 = vmatprep.subr.bf16.mxu0 0
    %340 = vmatpush1.bf16.msra.mxu0 0
    %341 = vmatprep.subr.bf16.mxu0 0
    %342 = vmatpush1.bf16.msra.mxu0 0
    %343 = vmatprep.subr.bf16.mxu0 0
    %344 = vmatpush1.bf16.msra.mxu0 0
    %345 = vmatprep.subr.bf16.mxu0 0
    %346 = vmatpush1.bf16.msra.mxu0 0
    %347 = vmatprep.mubr.bf16.mxu0 %v310
    %348 = vmatmul.mubr.bf16.gmra.mrb[0].mxu0 %v203
    %v349 = vpop.f32.mrb[0].mxu0
    %v350 = vadd.f32 %v235, %v349
    %v351 = vpop.f32.mrb[0].mxu0
    %v352 = vpop.f32.mrb[0].mxu0
    %v353 = vadd.f32 %v235, %v352
    %v354 = vpop.f32.mrb[0].mxu0
    %355 = vmatprep.mubr.bf16.mxu0 %v313
    %356 = vmatmul.mubr.bf16.gmra.mrb[0].mxu0 %v205
    %v357 = vpop.f32.mrb[0].mxu0
    %v358 = vadd.f32 %v235, %v357
    %v359 = vpop.f32.mrb[0].mxu0
    %v360 = vpop.f32.mrb[0].mxu0
    %v361 = vadd.f32 %v235, %v360
    %v362 = vpop.f32.mrb[0].mxu0
    %363 = vdwg.mxu0
    %v364 = vmax.f32 %v350, 0.0
    %v365 = vmax.f32 %v353, 0.0
    %v366 = vmax.f32 %v358, 0.0
    %v367 = vmax.f32 %v361, 0.0
    %v368 = vadd.f32 %v364, %v365
    %v369 = vadd.f32 %v368, %v366
    %v370 = vadd.f32 %v369, %v367
    %v371 = vrot.slane %v370, 4
    %v372 = vadd.f32 %v370, %v371
    %v373 = vrot.slane %v372, 2
    %v374 = vadd.f32 %v372, %v373
    %v375 = vrot.slane %v374, 1
    %v376 = vadd.f32 %v374, %v375
    %377 = vrot.lane.b32.xlu0 %v376, 8
    %v378 = vpop.permute.xlu0 %377
    %v379 = vadd.f32 %v376, %v378
    %380 = vrot.lane.b32.xlu0 %v379, 16
    %v381 = vpop.permute.xlu0 %380
    %v382 = vadd.f32 %v379, %v381
    %383 = vrot.lane.b32.xlu0 %v382, 32
    %v384 = vpop.permute.xlu0 %383
    %v385 = vadd.f32 %v382, %v384
    %386 = vrot.lane.b32.xlu0 %v385, 64
    %v387 = vpop.permute.xlu0 %386
    %v388 = vadd.f32 %v385, %v387
    %v389 = vmul.f32 %v364, %v364
    %v390 = vmul.f32 %v365, %v365
    %v391 = vmul.f32 %v366, %v366
    %v392 = vmul.f32 %v367, %v367
    %v393 = vadd.f32 %v389, %v390
    %v394 = vadd.f32 %v393, %v391
    %v395 = vadd.f32 %v394, %v392
    %v396 = vrot.slane %v395, 4
    %v397 = vadd.f32 %v395, %v396
    %v398 = vrot.slane %v397, 2
    %v399 = vadd.f32 %v397, %v398
    %v400 = vrot.slane %v399, 1
    %v401 = vadd.f32 %v399, %v400
    %402 = vrot.lane.b32.xlu0 %v401, 8
    %v403 = vpop.permute.xlu0 %402
    %v404 = vadd.f32 %v401, %v403
    %405 = vrot.lane.b32.xlu0 %v404, 16
    %v406 = vpop.permute.xlu0 %405
    %v407 = vadd.f32 %v404, %v406
    %408 = vrot.lane.b32.xlu0 %v407, 32
    %v409 = vpop.permute.xlu0 %408
    %v410 = vadd.f32 %v407, %v409
    %411 = vrot.lane.b32.xlu0 %v410, 64
    %v412 = vpop.permute.xlu0 %411
    %v413 = vadd.f32 %v410, %v412
    %v414 = vmul.f32 %v388, 0.001953125
    %v415 = vmul.f32 %v413, 0.001953125
    %v416 = vmul.f32 %v414, %v414
    %v417 = vsub.f32 %v415, %v416
    %v418 = vmax.f32 %v417, 0.0
    %v419 = vadd.f32 %v418, 1e-05
    %v420 = vrsqrt.pop %v419
    %v421 = vmul.f32 %v72, %v420
    %v422 = vmul.f32 %v414, %v421
    %v423 = vsub.f32 %v73, %v422
    %v425 = vlaneseq
    %v426 = vshrl.u32 %v425, 7
    %v427 = vsub.s32 0, %v426
    %v428 = vrot.slane %v421, %v427
    %v430 = vmul.f32 %v364, %v428
    %v431 = vmul.f32 %v365, %v428
    %v432 = vmul.f32 %v366, %v428
    %v433 = vmul.f32 %v367, %v428
    %v435 = vlaneseq
    %v436 = vshrl.u32 %v435, 7
    %v437 = vsub.s32 0, %v436
    %v438 = vrot.slane %v423, %v437
    %v440 = vadd.f32 %v430, %v438
    %v441 = vadd.f32 %v431, %v438
    %v442 = vadd.f32 %v432, %v438
    %v443 = vadd.f32 %v433, %v438
    %v444 = vld [vmem:[%s4] sm:$0x1]
    %v445 = vrot.slane %v440, 7
    %v446 = vrot.slane %v441, 7
    %v447 = vrot.slane %v442, 7
    %v448 = vrot.slane %v443, 7
    %v449 = vsel %vm144, %v447, %v448
    %v450 = vsel %vm144, %v446, %v447
    %v451 = vsel %vm144, %v445, %v446
    %v452 = vsel %vm144, %v448, %v445
    %v453 = vsel %vm153, %v452, 0.0
    %v454 = vsel %vm154, %v451, 0.0
    %v455 = vsel %vm155, %v450, 0.0
    %v456 = vsel %vm156, %v449, 0.0
    %v457 = vrot.slane %v440, 1
    %v458 = vrot.slane %v441, 1
    %v459 = vrot.slane %v442, 1
    %v460 = vrot.slane %v443, 1
    %v461 = vsel %vm165, %v459, %v460
    %v462 = vsel %vm165, %v458, %v459
    %v463 = vsel %vm165, %v457, %v458
    %v464 = vsel %vm165, %v460, %v457
    %v465 = vsel %vm174, %v463, 0.0
    %v466 = vsel %vm175, %v462, 0.0
    %v467 = vsel %vm176, %v461, 0.0
    %v468 = vsel %vm177, %v464, 0.0
    %v469 = vpack.c.bf16 %v454, %v453
    %v470 = vpack.c.bf16 %v441, %v440
    %v471 = vpack.c.bf16 %v466, %v465
    %v472 = vpack.c.bf16 %v456, %v455
    %v473 = vpack.c.bf16 %v443, %v442
    %v474 = vpack.c.bf16 %v468, %v467
    %v475 = vld [vmem:[#allocation8] sm:$0xf]
    %v476 = vld [vmem:[#allocation8 + $0x4] sm:$0xf]
    %v477 = vld [vmem:[#allocation8 + $0x8] sm:$0xf]
    %v478 = vld [vmem:[#allocation8 + $0xc] sm:$0xf]
    %v479 = vld [vmem:[#allocation8 + $0x10] sm:$0xf]
    %v480 = vld [vmem:[#allocation8 + $0x14] sm:$0xf]
    %v481 = vld [vmem:[#allocation8 + $0x18] sm:$0xf]
    %v482 = vld [vmem:[#allocation8 + $0x1c] sm:$0xf]
    %v483 = vld [vmem:[#allocation8 + $0x20] sm:$0xf]
    %v484 = vld [vmem:[#allocation8 + $0x24] sm:$0xf]
    %v485 = vld [vmem:[#allocation8 + $0x28] sm:$0xf]
    %v486 = vld [vmem:[#allocation8 + $0x2c] sm:$0xf]
    %v487 = vld [vmem:[#allocation8 + $0x30] sm:$0xf]
    %v488 = vld [vmem:[#allocation8 + $0x34] sm:$0xf]
    %v489 = vld [vmem:[#allocation8 + $0x38] sm:$0xf]
    %v490 = vld [vmem:[#allocation8 + $0x3c] sm:$0xf]
    %v491 = vld [vmem:[#allocation8 + $0x40] sm:$0xf]
    %v492 = vld [vmem:[#allocation8 + $0x44] sm:$0xf]
    %v493 = vld [vmem:[#allocation8 + $0x48] sm:$0xf]
    %v494 = vld [vmem:[#allocation8 + $0x4c] sm:$0xf]
    %v495 = vld [vmem:[#allocation8 + $0x50] sm:$0xf]
    %v496 = vld [vmem:[#allocation8 + $0x54] sm:$0xf]
    %v497 = vld [vmem:[#allocation8 + $0x58] sm:$0xf]
    %v498 = vld [vmem:[#allocation8 + $0x5c] sm:$0xf]
    %v499 = vld [vmem:[#allocation8 + $0x60] sm:$0xf]
    %v500 = vld [vmem:[#allocation8 + $0x64] sm:$0xf]
    %v501 = vld [vmem:[#allocation8 + $0x68] sm:$0xf]
    %v502 = vld [vmem:[#allocation8 + $0x6c] sm:$0xf]
    %v503 = vld [vmem:[#allocation8 + $0x70] sm:$0xf]
    %v504 = vld [vmem:[#allocation8 + $0x74] sm:$0xf]
    %v505 = vld [vmem:[#allocation8 + $0x78] sm:$0xf]
    %v506 = vld [vmem:[#allocation8 + $0x7c] sm:$0xf]
    %v507 = vld [vmem:[#allocation8 + $0x80] sm:$0xf]
    %v508 = vld [vmem:[#allocation8 + $0x84] sm:$0xf]
    %v509 = vld [vmem:[#allocation8 + $0x88] sm:$0xf]
    %v510 = vld [vmem:[#allocation8 + $0x8c] sm:$0xf]
    %v511 = vld [vmem:[#allocation8 + $0x90] sm:$0xf]
    %v512 = vld [vmem:[#allocation8 + $0x94] sm:$0xf]
    %v513 = vld [vmem:[#allocation8 + $0x98] sm:$0xf]
    %v514 = vld [vmem:[#allocation8 + $0x9c] sm:$0xf]
    %v515 = vld [vmem:[#allocation8 + $0xa0] sm:$0xf]
    %v516 = vld [vmem:[#allocation8 + $0xa4] sm:$0xf]
    %v517 = vld [vmem:[#allocation8 + $0xa8] sm:$0xf]
    %v518 = vld [vmem:[#allocation8 + $0xac] sm:$0xf]
    %v519 = vld [vmem:[#allocation8 + $0xb0] sm:$0xf]
    %v520 = vld [vmem:[#allocation8 + $0xb4] sm:$0xf]
    %v521 = vld [vmem:[#allocation8 + $0xb8] sm:$0xf]
    %v522 = vld [vmem:[#allocation8 + $0xbc] sm:$0xf]
    %v524 = vlaneseq
    %v525 = vshrl.u32 %v524, 7
    %v526 = vsub.s32 0, %v525
    %v527 = vrot.slane %v444, %v526
    %v577 = vunpack.c.l.b16 %v475
    %v578 = vunpack.c.l.b16 %v476
    %v579 = vunpack.c.l.b16 %v477
    %v580 = vunpack.c.l.b16 %v478
    %v581 = vunpack.c.l.b16 %v479
    %v582 = vunpack.c.l.b16 %v480
    %v583 = vunpack.c.l.b16 %v481
    %v584 = vunpack.c.l.b16 %v482
    %v585 = vunpack.c.l.b16 %v483
    %v586 = vunpack.c.l.b16 %v484
    %v587 = vunpack.c.l.b16 %v485
    %v588 = vunpack.c.l.b16 %v486
    %v589 = vunpack.c.l.b16 %v487
    %v590 = vunpack.c.l.b16 %v488
    %v591 = vunpack.c.l.b16 %v489
    %v592 = vunpack.c.l.b16 %v490
    %v593 = vunpack.c.l.b16 %v491
    %v594 = vunpack.c.l.b16 %v492
    %v595 = vunpack.c.l.b16 %v493
    %v596 = vunpack.c.l.b16 %v494
    %v597 = vunpack.c.l.b16 %v495
    %v598 = vunpack.c.l.b16 %v496
    %v599 = vunpack.c.l.b16 %v497
    %v600 = vunpack.c.l.b16 %v498
    %v601 = vunpack.c.l.b16 %v499
    %v602 = vunpack.c.l.b16 %v500
    %v603 = vunpack.c.l.b16 %v501
    %v604 = vunpack.c.l.b16 %v502
    %v605 = vunpack.c.l.b16 %v503
    %v606 = vunpack.c.l.b16 %v504
    %v607 = vunpack.c.l.b16 %v505
    %v608 = vunpack.c.l.b16 %v506
    %v609 = vunpack.c.l.b16 %v507
    %v610 = vunpack.c.l.b16 %v508
    %v611 = vunpack.c.l.b16 %v509
    %v612 = vunpack.c.l.b16 %v510
    %v613 = vunpack.c.l.b16 %v511
    %v614 = vunpack.c.l.b16 %v512
    %v615 = vunpack.c.l.b16 %v513
    %v616 = vunpack.c.l.b16 %v514
    %v617 = vunpack.c.l.b16 %v515
    %v618 = vunpack.c.l.b16 %v516
    %v619 = vunpack.c.l.b16 %v517
    %v620 = vunpack.c.l.b16 %v518
    %v621 = vunpack.c.l.b16 %v519
    %v622 = vunpack.c.l.b16 %v520
    %v623 = vunpack.c.l.b16 %v521
    %v624 = vunpack.c.l.b16 %v522
    %v625 = vpack.c.b16 %v578, %v577
    %v626 = vpack.c.b16 %v580, %v579
    %v627 = vpack.c.b16 %v582, %v581
    %v628 = vpack.c.b16 %v584, %v583
    %v629 = vpack.c.b16 %v586, %v585
    %v630 = vpack.c.b16 %v588, %v587
    %v631 = vpack.c.b16 %v590, %v589
    %v632 = vpack.c.b16 %v592, %v591
    %v633 = vpack.c.b16 %v594, %v593
    %v634 = vpack.c.b16 %v596, %v595
    %v635 = vpack.c.b16 %v598, %v597
    %v636 = vpack.c.b16 %v600, %v599
    %v637 = vpack.c.b16 %v602, %v601
    %v638 = vpack.c.b16 %v604, %v603
    %v639 = vpack.c.b16 %v606, %v605
    %v640 = vpack.c.b16 %v608, %v607
    %v641 = vpack.c.b16 %v610, %v609
    %v642 = vpack.c.b16 %v612, %v611
    %v643 = vpack.c.b16 %v614, %v613
    %v644 = vpack.c.b16 %v616, %v615
    %v645 = vpack.c.b16 %v618, %v617
    %v646 = vpack.c.b16 %v620, %v619
    %v647 = vpack.c.b16 %v622, %v621
    %v648 = vpack.c.b16 %v624, %v623
    %673 = vmatprep.subr.bf16.mxu0 0
    %674 = vmatpush1.bf16.msra.mxu0 %v625
    %675 = vmatprep.subr.bf16.mxu0 0
    %676 = vmatpush1.bf16.msra.mxu0 %v626
    %677 = vmatprep.subr.bf16.mxu0 0
    %678 = vmatpush1.bf16.msra.mxu0 %v627
    %679 = vmatprep.subr.bf16.mxu0 0
    %680 = vmatpush1.bf16.msra.mxu0 %v628
    %681 = vmatprep.subr.bf16.mxu0 0
    %682 = vmatpush1.bf16.msra.mxu0 %v629
    %683 = vmatprep.subr.bf16.mxu0 0
    %684 = vmatpush1.bf16.msra.mxu0 %v630
    %685 = vmatprep.subr.bf16.mxu0 0
    %686 = vmatpush1.bf16.msra.mxu0 %v631
    %687 = vmatprep.subr.bf16.mxu0 0
    %688 = vmatpush1.bf16.msra.mxu0 %v632
    %689 = vmatprep.subr.bf16.mxu0 0
    %690 = vmatpush1.bf16.msra.mxu0 %v633
    %691 = vmatprep.subr.bf16.mxu0 0
    %692 = vmatpush1.bf16.msra.mxu0 %v634
    %693 = vmatprep.subr.bf16.mxu0 0
    %694 = vmatpush1.bf16.msra.mxu0 %v635
    %695 = vmatprep.subr.bf16.mxu0 0
    %696 = vmatpush1.bf16.msra.mxu0 %v636
    %697 = vmatprep.subr.bf16.mxu0 0
    %698 = vmatpush1.bf16.msra.mxu0 %v637
    %699 = vmatprep.subr.bf16.mxu0 0
    %700 = vmatpush1.bf16.msra.mxu0 %v638
    %701 = vmatprep.subr.bf16.mxu0 0
    %702 = vmatpush1.bf16.msra.mxu0 %v639
    %703 = vmatprep.subr.bf16.mxu0 0
    %704 = vmatpush1.bf16.msra.mxu0 %v640
    %705 = vmatprep.mubr.bf16.mxu0 %v470
    %706 = vmatmul.mubr.bf16.gmra.mrb[0].mxu0 %v469
    %v707 = vpop.f32.mrb[0].mxu0
    %v708 = vadd.f32 %v527, %v707
    %v709 = vpop.f32.mrb[0].mxu0
    %v710 = vpop.f32.mrb[0].mxu0
    %v711 = vadd.f32 %v527, %v710
    %v712 = vpop.f32.mrb[0].mxu0
    %713 = vmatprep.mubr.bf16.mxu0 %v473
    %714 = vmatmul.mubr.bf16.gmra.mrb[0].mxu0 %v472
    %v715 = vpop.f32.mrb[0].mxu0
    %v716 = vadd.f32 %v527, %v715
    %v717 = vpop.f32.mrb[0].mxu0
    %v718 = vpop.f32.mrb[0].mxu0
    %v719 = vadd.f32 %v527, %v718
    %v720 = vpop.f32.mrb[0].mxu0
    %721 = vdwg.mxu0
    %722 = vmatprep.subr.bf16.mxu0 0
    %723 = vmatpush1.bf16.msra.mxu0 %v641
    %724 = vmatprep.subr.bf16.mxu0 0
    %725 = vmatpush1.bf16.msra.mxu0 %v642
    %726 = vmatprep.subr.bf16.mxu0 0
    %727 = vmatpush1.bf16.msra.mxu0 %v643
    %728 = vmatprep.subr.bf16.mxu0 0
    %729 = vmatpush1.bf16.msra.mxu0 %v644
    %730 = vmatprep.subr.bf16.mxu0 0
    %731 = vmatpush1.bf16.msra.mxu0 %v645
    %732 = vmatprep.subr.bf16.mxu0 0
    %733 = vmatpush1.bf16.msra.mxu0 %v646
    %734 = vmatprep.subr.bf16.mxu0 0
    %735 = vmatpush1.bf16.msra.mxu0 %v647
    %736 = vmatprep.subr.bf16.mxu0 0
    %737 = vmatpush1.bf16.msra.mxu0 %v648
    %738 = vmatprep.subr.bf16.mxu0 0
    %739 = vmatpush1.bf16.msra.mxu0 0
    %740 = vmatprep.subr.bf16.mxu0 0
    %741 = vmatpush1.bf16.msra.mxu0 0
    %742 = vmatprep.subr.bf16.mxu0 0
    %743 = vmatpush1.bf16.msra.mxu0 0
    %744 = vmatprep.subr.bf16.mxu0 0
    %745 = vmatpush1.bf16.msra.mxu0 0
    %746 = vmatprep.subr.bf16.mxu0 0
    %747 = vmatpush1.bf16.msra.mxu0 0
    %748 = vmatprep.subr.bf16.mxu0 0
    %749 = vmatpush1.bf16.msra.mxu0 0
    %750 = vmatprep.subr.bf16.mxu0 0
    %751 = vmatpush1.bf16.msra.mxu0 0
    %752 = vmatprep.subr.bf16.mxu0 0
    %753 = vmatpush1.bf16.msra.mxu0 0
    %754 = vmatprep.mubr.bf16.mxu0 0
    %755 = vmatmul.mubr.bf16.gmra.mrb[0].mxu0 %v471
    %v756 = vpop.f32.mrb[0].mxu0
    %v757 = vadd.f32 %v708, %v756
    %v758 = vpop.f32.mrb[0].mxu0
    %v759 = vpop.f32.mrb[0].mxu0
    %v760 = vadd.f32 %v711, %v759
    %v761 = vpop.f32.mrb[0].mxu0
    %762 = vmatprep.mubr.bf16.mxu0 0
    %763 = vmatmul.mubr.bf16.gmra.mrb[0].mxu0 %v474
    %v764 = vpop.f32.mrb[0].mxu0
    %v765 = vadd.f32 %v716, %v764
    %v766 = vpop.f32.mrb[0].mxu0
    %v767 = vpop.f32.mrb[0].mxu0
    %v768 = vadd.f32 %v719, %v767
    %v769 = vpop.f32.mrb[0].mxu0
    %770 = vdwg.mxu0
    %v771 = vmax.f32 %v757, 0.0
    %v772 = vmax.f32 %v760, 0.0
    %v773 = vmax.f32 %v765, 0.0
    %v774 = vmax.f32 %v768, 0.0
    %v775 = vadd.f32 %v771, %v772
    %v776 = vadd.f32 %v775, %v773
    %v777 = vadd.f32 %v776, %v774
    %v778 = vrot.slane %v777, 4
    %v779 = vadd.f32 %v777, %v778
    %v780 = vrot.slane %v779, 2
    %v781 = vadd.f32 %v779, %v780
    %v782 = vrot.slane %v781, 1
    %v783 = vadd.f32 %v781, %v782
    %784 = vrot.lane.b32.xlu0 %v783, 8
    %v785 = vpop.permute.xlu0 %784
    %v786 = vadd.f32 %v783, %v785
    %787 = vrot.lane.b32.xlu0 %v786, 16
    %v788 = vpop.permute.xlu0 %787
    %v789 = vadd.f32 %v786, %v788
    %790 = vrot.lane.b32.xlu0 %v789, 32
    %v791 = vpop.permute.xlu0 %790
    %v792 = vadd.f32 %v789, %v791
    %793 = vrot.lane.b32.xlu0 %v792, 64
    %v794 = vpop.permute.xlu0 %793
    %v795 = vadd.f32 %v792, %v794
    %v796 = vmul.f32 %v771, %v771
    %v797 = vmul.f32 %v772, %v772
    %v798 = vmul.f32 %v773, %v773
    %v799 = vmul.f32 %v774, %v774
    %v800 = vadd.f32 %v796, %v797
    %v801 = vadd.f32 %v800, %v798
    %v802 = vadd.f32 %v801, %v799
    %v803 = vrot.slane %v802, 4
    %v804 = vadd.f32 %v802, %v803
    %v805 = vrot.slane %v804, 2
    %v806 = vadd.f32 %v804, %v805
    %v807 = vrot.slane %v806, 1
    %v808 = vadd.f32 %v806, %v807
    %809 = vrot.lane.b32.xlu0 %v808, 8
    %v810 = vpop.permute.xlu0 %809
    %v811 = vadd.f32 %v808, %v810
    %812 = vrot.lane.b32.xlu0 %v811, 16
    %v813 = vpop.permute.xlu0 %812
    %v814 = vadd.f32 %v811, %v813
    %815 = vrot.lane.b32.xlu0 %v814, 32
    %v816 = vpop.permute.xlu0 %815
    %v817 = vadd.f32 %v814, %v816
    %818 = vrot.lane.b32.xlu0 %v817, 64
    %v819 = vpop.permute.xlu0 %818
    %v820 = vadd.f32 %v817, %v819
    %v821 = vmul.f32 %v795, 0.001953125
    %v822 = vmul.f32 %v820, 0.001953125
    %v823 = vmul.f32 %v821, %v821
    %v824 = vsub.f32 %v822, %v823
    %v825 = vmax.f32 %v824, 0.0
    %v826 = vadd.f32 %v825, 1e-05
    %v827 = vrsqrt.pop %v826
    %v828 = vmul.f32 %v72, %v827
    %v829 = vmul.f32 %v821, %v828
    %v830 = vsub.f32 %v73, %v829
    %v832 = vlaneseq
    %v833 = vshrl.u32 %v832, 7
    %v834 = vsub.s32 0, %v833
    %v835 = vrot.slane %v828, %v834
    %v837 = vmul.f32 %v771, %v835
    %v838 = vmul.f32 %v772, %v835
    %v839 = vmul.f32 %v773, %v835
    %v840 = vmul.f32 %v774, %v835
    %v842 = vlaneseq
    %v843 = vshrl.u32 %v842, 7
    %v844 = vsub.s32 0, %v843
    %v845 = vrot.slane %v830, %v844
    %v847 = vadd.f32 %v837, %v845
    %v848 = vadd.f32 %v838, %v845
    %v849 = vadd.f32 %v839, %v845
    %v850 = vadd.f32 %v840, %v845
    %v851 = vpack.c.bf16 %v848, %v847
    %v852 = vpack.c.bf16 %v850, %v849
    %v855 = vunpack.c.l.b16 %v851
    %v856 = vunpack.c.h.b16 %v851
    %v857 = vunpack.c.l.b16 %v852
    %v858 = vunpack.c.h.b16 %v852
    %v859 = vpack.c.b16 %v855, %v855
    %v860 = vpack.c.b16 %v856, %v856
    %v861 = vpack.c.b16 %v857, %v857
    %v862 = vpack.c.b16 %v858, %v858
    %867 = vst [vmem:[#allocation10] sm:$0xf] %v859
    %868 = vst [vmem:[#allocation10 + $0x4] sm:$0xf] %v860
    %869 = vst [vmem:[#allocation10 + $0x8] sm:$0xf] %v861
    %870 = vst [vmem:[#allocation10 + $0xc] sm:$0xf] %v862
    %871 = vst [vmem:[#allocation2] sm:$0xff] %v847
    %872 = vst [vmem:[#allocation2 + $0x8] sm:$0xff] %v848
    %873 = vst [vmem:[#allocation2 + $0x10] sm:$0xff] %v849
    %874 = vst [vmem:[#allocation2 + $0x18] sm:$0xff] %v850
    %v875 = vld [vmem:[#allocation2] ss:$2 sm:$0xff]
    %s876 = scalar_lea.vmem [#allocation2], 16
    %v877 = vld [vmem:[%s876] ss:$2 sm:$0xff]
    %s878 = scalar_lea.vmem [#allocation2], 1
    %v879 = vld [vmem:[%s878] ss:$2 sm:$0xff]
    %s880 = scalar_lea.vmem [#allocation2], 17
    %v881 = vld [vmem:[%s880] ss:$2 sm:$0xff]
    %v882 = vmax.f32 %v875, %v879
    %v883 = vmax.f32 %v877, %v881
    %884 = vrot.lane.b32.xlu0 %v882, 120
    %v885 = vpop.permute.xlu0 %884
    %886 = vrot.lane.b32.xlu0 %v883, 120
    %v887 = vpop.permute.xlu0 %886
    %v888 = vmax.f32 %v882, %v885
    %v889 = vmax.f32 %v883, %v887
    %890 = vst [vmem:[#allocation9] sm:$0xff] %v888
    %891 = vst [vmem:[#allocation9 + $0x8] sm:$0xff] %v889
    // Predicated region
    $region42: #{tpu_custom_call.1} parent=1 // pred_check
      _
    $region43: #{tpu_custom_call.1} parent=1 // pred_check_branch
      %893 = sbr.rel (0) target = $region45
    $region44: #{tpu_custom_call.1} parent=1 // pred_region
      %s895 = ssub.s32 256, 256
      %896 = vsyncadd [#allocation5], %s895
      %s897 = sshll.u32 [#allocation9], 4
      %s898 = int_to_ptr.vmem [resolvable:$true] %s897
      %903 = dma.vmem_to_hbm [thread:$0]  %s898, 256, %s7, [#allocation5], 128, 128, 8
    $region45: #{tpu_custom_call.1} parent=1 // pred_fallthru
      _
    // Predicated region
    $region46: #{tpu_custom_call.1} parent=1 // pred_check
      _
    $region47: #{tpu_custom_call.1} parent=1 // pred_check_branch
      %905 = sbr.rel (0) target = $region49
    $region48: #{tpu_custom_call.1} parent=1 // pred_region
      %s907 = ssub.s32 256, 256
      %908 = vsyncadd [#allocation11], %s907
      %s909 = sshll.u32 [#allocation10], 4
      %s910 = int_to_ptr.vmem [resolvable:$true] %s909
      %915 = dma.vmem_to_hbm [thread:$0]  %s910, 256, %s8, [#allocation11], 64, 64, 4
    $region49: #{tpu_custom_call.1} parent=1 // pred_fallthru
      _
    // Predicated region
    $region50: #{tpu_custom_call.1} parent=1 // pred_check
      _
    $region51: #{tpu_custom_call.1} parent=1 // pred_check_branch
      %917 = sbr.rel (0) target = $region53
    $region52: #{tpu_custom_call.1} parent=1 // pred_region
      %918 = dma.done [#allocation5], 256
    $region53: #{tpu_custom_call.1} parent=1 // pred_fallthru
      _
    // Predicated region
    $region54: #{tpu_custom_call.1} parent=1 // pred_check
      _
    $region55: #{tpu_custom_call.1} parent=1 // pred_check_branch
      %920 = sbr.rel (0) target = $region57
    $region56: #{tpu_custom_call.1} parent=1 // pred_region
      %921 = dma.done [#allocation11], 256
    $region57: #{tpu_custom_call.1} parent=1 // pred_fallthru
      _
    %922 = vsyncpa [#allocation4], 1
    %923 = vsyncpa [#allocation7], 1
    %924 = vsyncpa [#allocation5], 1
    %925 = vsyncpa [#allocation11], 1

</llo_original>
